<compile_context>
chip_gen: v6e
topology: v6e:2x2x1
jax: 0.10.0
libtpu: 0.0.40
codegen_flags: <defaults>
</compile_context>

<pallas_src>
import math

import jax
import jax.numpy as jnp
from jax.experimental import pallas as pl
from jax.experimental.pallas import tpu as pltpu


def _round_up(a, m):
    return (a + m - 1) // m * m


def _vmem_capacity_bytes():
    """Physical VMEM per core; conservative 64 MiB default if the query fails."""
    default = 64 * 1024 * 1024
    cap = default
    try:
        info = pltpu.get_tpu_info()
        for attr in ("vmem_capacity_bytes", "vmem_size_bytes", "vmem_bytes"):
            v = getattr(info, attr, None)
            if v:
                cap = int(v)
                break
    except Exception:
        cap = default
    # Clamp to the known range of shipping generations.
    return max(64 * 1024 * 1024, min(cap, 128 * 1024 * 1024))


def _vmem_budget_and_limit():
    cap = _vmem_capacity_bytes()
    budget = (cap * 3) // 8                        # v7x ~24 MiB, v5e/v6e ~48 MiB
    limit = min((cap * 3) // 4, 96 * 1024 * 1024)  # v7x ~48 MiB, v5e/v6e 96 MiB
    return budget, limit


def _make_fourier_kernel(f_pad, input_dim, use_mxu):
    """Kernel over one (TN, K) row tile. b_ref is pre-scaled by 2*pi and F-padded."""

    def kernel(x_ref, b_ref, out_ref):
        x = x_ref[...].astype(jnp.float32)   # in-kernel upcast (hides under EUP/MXU)
        b = b_ref[...]                       # (K, F_pad) f32, already scaled by 2*pi
        if use_mxu:
            x_proj = jnp.dot(x, b, preferred_element_type=jnp.float32)
        else:
            # K <= 4: implicit-broadcast FMA on the VPU; MXU stays idle.
            x_proj = x[:, 0:1] * b[0:1, :]
            for kk in range(1, input_dim):
                x_proj = x_proj + x[:, kk:kk + 1] * b[kk:kk + 1, :]
        # Lane-dense half writes (f_pad is a multiple of 128): no concatenate
        # temporary, no masked vst on either half.
        # TODO(synk): if profiling confirms the EUP slot binds, a tan-half-angle
        # rewrite could halve transcendental pushes; omitted pending numeric checks.
        out_ref[:, :f_pad] = jnp.sin(x_proj).astype(out_ref.dtype)
        out_ref[:, f_pad:] = jnp.cos(x_proj).astype(out_ref.dtype)

    return kernel


# None = unprobed, True/False = decided once and reused.
_CORE_PARALLEL_STATE = {"ok": None}


def _dispatch_over_cores(call, num_blocks):
    """Prefer CORE_PARALLEL on the row axis (splits the grid across TensorCores,
    up to ~2x on v7x); probe once (compile + numeric check) and fall back to
    PARALLEL if unsupported on this chip / runtime."""
    core_parallel = getattr(pltpu, "CORE_PARALLEL", None)
    state = _CORE_PARALLEL_STATE
    if core_parallel is None or num_blocks < 2 or state["ok"] is False:
        return call(pltpu.PARALLEL)
    if state["ok"]:
        return call(core_parallel)
    try:
        out_cp = call(core_parallel)
        out_ref = call(pltpu.PARALLEL)
        ok = bool(jnp.allclose(out_cp.astype(jnp.float32),
                               out_ref.astype(jnp.float32),
                               atol=1e-6, rtol=1e-6))
    except Exception:
        state["ok"] = False
        return call(pltpu.PARALLEL)
    state["ok"] = ok
    return out_cp if ok else out_ref


def fourier_features(x, B, *, max_rows_per_block=4096, use_mxu=None, out_dtype=None):
    """x: (..., K), B: (K, F)  ->  (..., 2F) in `out_dtype` (default x.dtype).

    Matches torch: cat([sin(2*pi*x@B), cos(2*pi*x@B)], dim=-1); the matmul and the
    sin/cos arguments are always computed in f32.
    """
    orig_lead = x.shape[:-1]
    k = x.shape[-1]
    kb, f = B.shape
    assert k == kb, f"input_dim mismatch: x has {k}, B has {kb}"
    out_dtype = jnp.dtype(x.dtype if out_dtype is None else out_dtype)

    n = 1
    for d in orig_lead:
        n *= int(d)
    x2 = x.reshape(n, k)                        # native dtype, no host cast / row pad

    # Fold 2*pi into B once on the host (K*F work) and zero-pad F to a multiple of
    # 128 so both half-stores start on a lane-tile boundary.
    f_pad = _round_up(f, 128)
    b_scaled = (2.0 * math.pi) * B.astype(jnp.float32)
    if f_pad != f:
        b_scaled = jnp.pad(b_scaled, ((0, 0), (0, f_pad - f)))

    if use_mxu is None:
        use_mxu = k > 4                         # K<=4: VPU broadcast-FMA, else MXU

    # Row-tile sizing from a per-generation VMEM budget.  Pallas double-buffers
    # every input, so the resident B counts twice.
    budget, vmem_limit = _vmem_budget_and_limit()
    x_item = jnp.dtype(x2.dtype).itemsize
    out_item = out_dtype.itemsize
    b_bytes = 4 * k * f_pad
    per_row = (2 * x_item * k               # double-buffered x tile
               + 2 * out_item * 2 * f_pad   # double-buffered output tile
               + 4 * (f_pad + k))           # f32 x_proj + in-kernel f32 cast of x
    avail = max(budget - 2 * b_bytes, per_row * 8)
    tn_cap = max(8, (avail // per_row) // 8 * 8)
    tn = min(max_rows_per_block, tn_cap, _round_up(n, 8))
    tn = max(8, tn // 8 * 8)

    num_blocks = pl.cdiv(n, tn)
    grid = (num_blocks,)

    def call(row_semantics):
        return pl.pallas_call(
            _make_fourier_kernel(f_pad, k, use_mxu),
            out_shape=jax.ShapeDtypeStruct((n, 2 * f_pad), out_dtype),
            grid=grid,
            in_specs=[
                pl.BlockSpec((tn, k), lambda i: (i, 0)),     # row tile of x
                pl.BlockSpec((k, f_pad), lambda i: (0, 0)),  # B resident in VMEM
            ],
            out_specs=pl.BlockSpec((tn, 2 * f_pad), lambda i: (i, 0)),
            compiler_params=pltpu.CompilerParams(
                dimension_semantics=(row_semantics,),
                vmem_limit_bytes=vmem_limit,
            ),
            cost_estimate=pl.CostEstimate(
                flops=2 * n * k * f_pad,
                transcendentals=2 * n * f_pad,
                bytes_accessed=(x_item * n * k + 4 * k * f_pad
                                + out_item * n * 2 * f_pad),
            ),
        )(x2, b_scaled)

    out = _dispatch_over_cores(call, num_blocks)

    if f_pad != f:
        out = jnp.concatenate([out[:, :f], out[:, f_pad:f_pad + f]], axis=-1)
    return out.reshape(*orig_lead, 2 * f)


def _reference(x, B):
    x_proj = 2.0 * math.pi * (x @ B)
    return jnp.concatenate([jnp.sin(x_proj), jnp.cos(x_proj)], axis=-1)


if __name__ == "__main__":
    key = jax.random.PRNGKey(0)
    k_b, k_x, k_xl, k_bs, k_xs, k_xh = jax.random.split(key, 6)

    # MatrixFunctionFourierTransformer(d_model=64, nhead=4) context:
    # FourierFeatures(d_model, 2*d_model) applied to (batch, seq, d_model).
    batch, seq, d_model = 2, 8, 64
    num_fourier = 2 * d_model           # F = 128 -> output width 256 (lane-dense)
    sigma = 1.0

    B = jax.random.normal(k_b, (d_model, num_fourier), jnp.float32) * sigma
    x = jax.random.normal(k_x, (batch, seq, d_model), jnp.float32)

    out = jax.block_until_ready(fourier_features(x, B))
    ref = _reference(x, B)
    assert out.shape == (batch, seq, 2 * num_fourier)
    assert out.dtype == jnp.float32
    assert jnp.allclose(out, ref, atol=1e-3, rtol=1e-3)

    # Multi-block grid with a ragged (Pallas-masked) last tile; also exercises the
    # CORE_PARALLEL probe since the grid has >= 2 blocks.
    xl = jax.random.normal(k_xl, (1000, d_model), jnp.float32)
    outl = jax.block_until_ready(fourier_features(xl, B, max_rows_per_block=256))
    assert outl.shape == (1000, 2 * num_fourier)
    assert jnp.allclose(outl, _reference(xl, B), atol=1e-3, rtol=1e-3)

    # Tiny input_dim (K=4): VPU broadcast-FMA path; F=32 exercises the F->128 lane
    # padding plus host-side output slicing.
    Bs = jax.random.normal(k_bs, (4, 32), jnp.float32) * sigma
    xs = jax.random.normal(k_xs, (8, 4), jnp.float32)
    outs = jax.block_until_ready(fourier_features(xs, Bs))
    assert outs.shape == (8, 64)
    assert jnp.allclose(outs, _reference(xs, Bs), atol=1e-3, rtol=1e-3)

    # Native bf16 activations: x stays bf16 through the BlockSpec (upcast in-kernel),
    # output stored in bf16 (halves the dominant HBM writeback stream).
    xh = jax.random.normal(k_xh, (4, 16, d_model), jnp.float32).astype(jnp.bfloat16)
    outh = jax.block_until_ready(fourier_features(xh, B))
    assert outh.shape == (4, 16, 2 * num_fourier)
    assert outh.dtype == jnp.bfloat16
    refh = _reference(xh.astype(jnp.float32), B).astype(jnp.bfloat16)
    assert jnp.allclose(outh.astype(jnp.float32), refh.astype(jnp.float32),
                        atol=1e-2, rtol=1e-2)

    print("KERNEL_OK")
</pallas_src>

<mosaic_0001>
module attributes {stable_mosaic.version = 11 : i64} {
  func.func @kernel(%arg0: i32, %arg1: memref<16x64xf32, #tpu.memory_space<vmem>>, %arg2: memref<64x128xf32, #tpu.memory_space<vmem>>, %arg3: memref<16x256xf32, #tpu.memory_space<vmem>>) attributes {dimension_semantics = [#tpu.dimension_semantics<parallel>], iteration_bounds = array<i64: 1>, scalar_prefetch = 0 : i64, scratch_operands = 0 : i64, tpu.core_type = #tpu.core_type<tc>, window_params = [{transform_indices = @transform_0, window_bounds = array<i64: 16, 64>}, {pipeline_mode = #tpu.pipeline_mode<synchronous>, transform_indices = @transform_1, window_bounds = array<i64: 64, 128>}, {transform_indices = @transform_2, window_bounds = array<i64: 16, 256>}]} {
    %c0 = arith.constant 0 : index
    %c0_0 = arith.constant 0 : index
    %0 = vector.load %arg1[%c0, %c0_0] : memref<16x64xf32, #tpu.memory_space<vmem>>, vector<16x64xf32>
    %c0_1 = arith.constant 0 : index
    %c0_2 = arith.constant 0 : index
    %1 = vector.load %arg2[%c0_1, %c0_2] : memref<64x128xf32, #tpu.memory_space<vmem>>, vector<64x128xf32>
    %cst = arith.constant dense<0.000000e+00> : vector<16x128xf32>
    %2 = tpu.matmul %0, %1, %cst {dimension_numbers = #tpu.dot_dimension_numbers<[1], [0], [0], [1], [0, 0, 1, 1], [], []>} : vector<16x64xf32>, vector<64x128xf32>, vector<16x128xf32> -> vector<16x128xf32>
    %3 = math.sin %2 : vector<16x128xf32>
    %c0_3 = arith.constant 0 : index
    %c0_4 = arith.constant 0 : index
    %4 = vector.load %arg3[%c0_3, %c0_4] : memref<16x256xf32, #tpu.memory_space<vmem>>, vector<16x128xf32>
    tpu.vector_store %arg3[%c0_3, %c0_4], %3 {strides = array<i32>} : memref<16x256xf32, #tpu.memory_space<vmem>>, vector<16x128xf32>,
    %5 = math.cos %2 : vector<16x128xf32>
    %c0_5 = arith.constant 0 : index
    %c128 = arith.constant 128 : index
    %6 = vector.load %arg3[%c0_5, %c128] : memref<16x256xf32, #tpu.memory_space<vmem>>, vector<16x128xf32>
    tpu.vector_store %arg3[%c0_5, %c128], %5 {strides = array<i32>} : memref<16x256xf32, #tpu.memory_space<vmem>>, vector<16x128xf32>,
    return
  }
  func.func @transform_0(%arg0: i32) -> (i32, i32) {
    %c0_i32 = arith.constant 0 : i32
    %c0_i32_0 = arith.constant 0 : i32
    return %arg0, %c0_i32 : i32, i32
  }
  func.func @transform_1(%arg0: i32) -> (i32, i32) {
    %c0_i32 = arith.constant 0 : i32
    %c0_i32_0 = arith.constant 0 : i32
    %c0_i32_1 = arith.constant 0 : i32
    return %c0_i32, %c0_i32_0 : i32, i32
  }
  func.func @transform_2(%arg0: i32) -> (i32, i32) {
    %c0_i32 = arith.constant 0 : i32
    %c0_i32_0 = arith.constant 0 : i32
    return %arg0, %c0_i32 : i32, i32
  }
}

</mosaic_0001>

<llo_original>
// kernel: tpu_custom_call.1
$region0: #{tpu_custom_call.1}
  #allocation0 [shape = 'u32[]', space=smem, size = 0x4, offset = 0x4, fixed_abs, tag = 'smem constant byte address 0x4 - core index']
  #allocation1 [shape = 'u32[144,128]{1,0:T(1,128)}', space=vmem, size = 0x12000, scoped, tag = 'internal scratch']
  %s0 = inlined_call_operand.hbm [shape: f32[16,64], index: 0, kind: input, shape index: {}]
  %s1 = inlined_call_operand.hbm [shape: f32[64,128], index: 1, kind: input, shape index: {}]
  %s2 = inlined_call_operand.hbm [shape: f32[16,256], index: 2, kind: output, shape index: {}]
  %s3 = sld [smem:[#allocation0]]
  $region26: #{tpu_custom_call.1} parent=0
    _
  %s5 = ssub.s32 1, %s3
  %s6 = scalar_select 0, %s5, %s3
  $region1: #{tpu_custom_call.1} parent=0
    #allocation2 [shape = 'u8[8192]{0}', space=vmem, size = 0x2000, scoped, tag = 'input window, operand 0, single buffered']
    #allocation3 [shape = 's32[1]{0}', space=sflag, size = 0x4, scoped, tag = 'scoped memory for tpu_custom_call.1']
    #allocation4 [shape = 's32[1]{0}', space=sflag, size = 0x4, scoped, tag = 'scoped memory for tpu_custom_call.1']
    #allocation5 [shape = 'u8[32768]{0}', space=vmem, size = 0x8000, scoped, tag = 'input window, operand 1, single buffered']
    #allocation6 [shape = 's32[1]{0}', space=sflag, size = 0x4, scoped, tag = 'scoped memory for tpu_custom_call.1']
    #allocation7 [shape = 'u8[16384]{0}', space=vmem, size = 0x4000, scoped, tag = 'output window, operand 0, single buffered']
    %7 = vsyncpa [#allocation3], 0
    %8 = vsyncpa [#allocation6], 0
    %9 = vsyncpa [#allocation4], 0
    // Predicated region
    $region2: #{tpu_custom_call.1} parent=1 // pred_check
      _
    $region3: #{tpu_custom_call.1} parent=1 // pred_check_branch
      %11 = sbr.rel (0) target = $region5
    $region4: #{tpu_custom_call.1} parent=1 // pred_region
      %s13 = ssub.s32 256, 256
      %14 = vsyncadd [#allocation3], %s13
      %s15 = sshll.u32 [#allocation2], 4
      %s16 = int_to_ptr.vmem [resolvable:$true] %s15
      %21 = dma.hbm_to_vmem [thread:$0]  %s0, 256, %s16, [#allocation3], 128, 128, 8
    $region5: #{tpu_custom_call.1} parent=1 // pred_fallthru
      _
    // Predicated region
    $region6: #{tpu_custom_call.1} parent=1 // pred_check
      _
    $region7: #{tpu_custom_call.1} parent=1 // pred_check_branch
      %23 = sbr.rel (0) target = $region9
    $region8: #{tpu_custom_call.1} parent=1 // pred_region
      %s25 = ssub.s32 1024, 1024
      %26 = vsyncadd [#allocation6], %s25
      %s27 = sshll.u32 [#allocation5], 4
      %s28 = int_to_ptr.vmem [resolvable:$true] %s27
      %33 = dma.hbm_to_vmem [thread:$0]  %s1, 1024, %s28, [#allocation6], 128, 128, 8
    $region9: #{tpu_custom_call.1} parent=1 // pred_fallthru
      _
    // Predicated region
    $region10: #{tpu_custom_call.1} parent=1 // pred_check
      _
    $region11: #{tpu_custom_call.1} parent=1 // pred_check_branch
      %35 = sbr.rel (0) target = $region13
    $region12: #{tpu_custom_call.1} parent=1 // pred_region
      %36 = dma.done [#allocation3], 256
    $region13: #{tpu_custom_call.1} parent=1 // pred_fallthru
      _
    // Predicated region
    $region14: #{tpu_custom_call.1} parent=1 // pred_check
      _
    $region15: #{tpu_custom_call.1} parent=1 // pred_check_branch
      %38 = sbr.rel (0) target = $region17
    $region16: #{tpu_custom_call.1} parent=1 // pred_region
      %39 = dma.done [#allocation6], 1024
    $region17: #{tpu_custom_call.1} parent=1 // pred_fallthru
      _
    %v40 = vld [vmem:[#allocation2] sm:$0xff]
    %v41 = vld [vmem:[#allocation2 + $0x8] sm:$0xff]
    %v42 = vld [vmem:[#allocation5] sm:$0xff]
    %v43 = vld [vmem:[#allocation5 + $0x8] sm:$0xff]
    %v44 = vld [vmem:[#allocation5 + $0x10] sm:$0xff]
    %v45 = vld [vmem:[#allocation5 + $0x18] sm:$0xff]
    %v46 = vld [vmem:[#allocation5 + $0x20] sm:$0xff]
    %v47 = vld [vmem:[#allocation5 + $0x28] sm:$0xff]
    %v48 = vld [vmem:[#allocation5 + $0x30] sm:$0xff]
    %v49 = vld [vmem:[#allocation5 + $0x38] sm:$0xff]
    %vm50 = vcmask 523264
    %v52 = vsel %vm50, %v40, 0
    %v55 = vsel %vm50, %v41, 0
    %57 = vmatprep.subr.mxu0 0.0
    %58 = vmatpush1.msra.mxu0 0.0
    %59 = vmatprep.subr.mxu0 0.0
    %60 = vmatpush1.msra.mxu0 0.0
    %61 = vmatprep.subr.mxu0 0.0
    %62 = vmatpush1.msra.mxu0 0.0
    %63 = vmatprep.subr.mxu0 0.0
    %64 = vmatpush1.msra.mxu0 0.0
    %65 = vmatprep.subr.mxu0 0.0
    %66 = vmatpush1.msra.mxu0 0.0
    %67 = vmatprep.subr.mxu0 0.0
    %68 = vmatpush1.msra.mxu0 0.0
    %69 = vmatprep.subr.mxu0 0.0
    %70 = vmatpush1.msra.mxu0 0.0
    %71 = vmatprep.subr.mxu0 0.0
    %72 = vmatpush1.msra.mxu0 0.0
    %73 = vmatprep.subr.mxu0 0.0
    %74 = vmatpush1.msra.mxu0 %v49
    %75 = vmatprep.subr.mxu0 0.0
    %76 = vmatpush1.msra.mxu0 %v48
    %77 = vmatprep.subr.mxu0 0.0
    %78 = vmatpush1.msra.mxu0 %v47
    %79 = vmatprep.subr.mxu0 0.0
    %80 = vmatpush1.msra.mxu0 %v46
    %81 = vmatprep.subr.mxu0 0.0
    %82 = vmatpush1.msra.mxu0 %v45
    %83 = vmatprep.subr.mxu0 0.0
    %84 = vmatpush1.msra.mxu0 %v44
    %85 = vmatprep.subr.mxu0 0.0
    %86 = vmatpush1.msra.mxu0 %v43
    %87 = vmatprep.subr.mxu0 0.0
    %88 = vmatpush1.msra.mxu0 %v42
    %89 = vmatprep.subr.mxu0 0.0
    %90 = vmatpush2.msra.mxu0 0.0
    %91 = vmatprep.subr.mxu0 0.0
    %92 = vmatpush2.msra.mxu0 0.0
    %93 = vmatprep.subr.mxu0 0.0
    %94 = vmatpush2.msra.mxu0 0.0
    %95 = vmatprep.subr.mxu0 0.0
    %96 = vmatpush2.msra.mxu0 0.0
    %97 = vmatprep.subr.mxu0 0.0
    %98 = vmatpush2.msra.mxu0 0.0
    %99 = vmatprep.subr.mxu0 0.0
    %100 = vmatpush2.msra.mxu0 0.0
    %101 = vmatprep.subr.mxu0 0.0
    %102 = vmatpush2.msra.mxu0 0.0
    %103 = vmatprep.subr.mxu0 0.0
    %104 = vmatpush2.msra.mxu0 0.0
    %105 = vmatprep.subr.mxu0 0.0
    %106 = vmatpush2.msra.mxu0 0.0
    %107 = vmatprep.subr.mxu0 0.0
    %108 = vmatpush2.msra.mxu0 0.0
    %109 = vmatprep.subr.mxu0 0.0
    %110 = vmatpush2.msra.mxu0 0.0
    %111 = vmatprep.subr.mxu0 0.0
    %112 = vmatpush2.msra.mxu0 0.0
    %113 = vmatprep.subr.mxu0 0.0
    %114 = vmatpush2.msra.mxu0 0.0
    %115 = vmatprep.subr.mxu0 0.0
    %116 = vmatpush2.msra.mxu0 0.0
    %117 = vmatprep.subr.mxu0 0.0
    %118 = vmatpush2.msra.mxu0 0.0
    %119 = vmatprep.subr.mxu0 0.0
    %120 = vmatpush2.msra.mxu0 0.0
    %121 = vmatprep.mubr.f32.mxu0 0.0
    %122 = vmatmul.mubr.f32.gmra.mxu0 %v52
    %v123 = vpop.f32.mrf.mxu0
    %v124 = vadd.f32 0.0, %v123
    %v125 = vpop.f32.mrf.mxu0
    %126 = vmatprep.mubr.f32.mxu0 0.0
    %127 = vmatmul.mubr.f32.gmra.mxu0 %v55
    %v128 = vpop.f32.mrf.mxu0
    %v129 = vadd.f32 0.0, %v128
    %v130 = vpop.f32.mrf.mxu0
    %131 = vdwg.mxu0
    %v132 = vand.u32 2147483647, %v124
    %vm133 = vcmp.le.f32.partialorder %v132, 0.7853982
    %vm134 = vcmp.lt.s32.totalorder %v124, 0
    %v135 = vand.u32 %v124, 2139095040
    %v136 = vshrl.u32 %v135, 23
    %v137 = vsub.s32 %v136, 127
    %v138 = vand.u32 2147483647, %v124
    %v139 = vand.u32 %v138, 8388607
    %v140 = vor.u32 %v139, 8388608
    %v141 = vsub.s32 0, %v140
    %v142 = vadd.s32 %v137, 1
    %vm143 = vcmp.gt.s32.totalorder %v142, 0
    %v144 = vsel %vm143, %v142, 0
    %v145 = vshrl.u32 %v144, 5
    %v146 = vand.u32 %v144, 31
    %v147 = vsub.s32 32, %v146
    %v148 = vshrl.u32 683565275, %v147
    %v149 = vshll.u32 683565275, %v146
    %v150 = vshrl.u32 2475754826, %v147
    %v151 = vor.u32 %v149, %v150
    %v152 = vshll.u32 2475754826, %v146
    %v153 = vshrl.u32 2131351028, %v147
    %v154 = vor.u32 %v152, %v153
    %v155 = vshll.u32 2131351028, %v146
    %v156 = vshrl.u32 2102212464, %v147
    %v157 = vor.u32 %v155, %v156
    %v158 = vshll.u32 2102212464, %v146
    %v159 = vshrl.u32 920167782, %v147
    %v160 = vor.u32 %v158, %v159
    %v161 = vshll.u32 920167782, %v146
    %v162 = vshrl.u32 1326507024, %v147
    %v163 = vor.u32 %v161, %v162
    %vm164 = vcmp.lt.s32.totalorder %v145, 1
    %vm165 = vcmp.lt.s32.totalorder %v145, 2
    %vm166 = vcmp.lt.s32.totalorder %v145, 3
    %vm167 = vcmp.lt.s32.totalorder %v145, 4
    %v168 = vsel %vm164, %v148, %v151
    %v169 = vsel %vm167, %v157, 2102212464
    %v170 = vsel %vm166, %v154, %v169
    %v171 = vsel %vm165, %v168, %v170
    %v172 = vsel %vm164, %v151, %v154
    %v173 = vsel %vm167, %v160, 920167782
    %v174 = vsel %vm166, %v157, %v173
    %v175 = vsel %vm165, %v172, %v174
    %v176 = vsel %vm164, %v154, %v157
    %v177 = vsel %vm167, %v163, 1326507024
    %v178 = vsel %vm166, %v160, %v177
    %v179 = vsel %vm165, %v176, %v178
    %v180 = vshll.u32 %v140, 8
    %v181 = vmul.u32.u64.compose %v180, %v179
    %v182 = vextract.low.u32 %v181
    %v183 = vextract.high.u32 %v181
    %v184 = vmul.u32.u64.compose %v180, %v175
    %v185 = vextract.low.u32 %v184
    %v186 = vextract.high.u32 %v184
    %v187 = vmul.u32 %v180, %v171
    %v188 = vadd.s32 %v183, %v185
    %vm189 = vc.u32 %v183, %v185
    %v190 = vadd.s32 %v186, 1
    %v191 = vsel %vm189, %v190, %v186
    %v192 = vadd.s32 %v187, %v191
    %v193 = vadd.s32 %v192, 536870912
    %v194 = vshrl.u32 %v193, 30
    %v195 = vshll.u32 %v194, 30
    %v196 = vsub.s32 %v192, %v195
    %vm197 = vcmp.lt.s32.totalorder %v196, 0
    %v198 = vsub.s32 0, %v196
    %v199 = vsel %vm197, %v198, %v196
    %v200 = vclz %v199
    %v201 = vsub.s32 %v200, 2
    %vm202 = vcmp.gt.s32.totalorder 0, %v201
    %v203 = vsel %vm202, 0, %v201
    %v204 = vsub.s32 32, %v203
    %v205 = vshll.u32 %v196, %v203
    %v206 = vshrl.u32 %v188, %v204
    %v207 = vor.u32 %v205, %v206
    %v208 = vsub.s32 4294967266, %v203
    %v209 = vadd.s32 %v208, 127
    %v210 = vshll.u32 %v209, 23
    %v211 = vor.u32 4788187, %v210
    %v212 = vand.u32 2147483647, %v211
    %v214 = vcvt.s32.f32 %v207
    %v215 = vmul.f32 %v214, %v212
    %v216 = vxor.u32 %v215, 2147483648
    %v217 = vsel %vm134, %v216, %v215
    %v218 = vsub.s32 4, %v194
    %v219 = vsel %vm134, %v218, %v194
    %v220 = vsel %vm133, %v124, %v217
    %v221 = vsel %vm133, 0, %v219
    %v222 = vcosq.f32.pop %v220
    %v223 = vsinq.f32.pop %v220
    %vm224 = vweird.f32 %v124
    %v225 = vadd.s32 %v221, 3
    %v226 = vand.u32 %v225, 3
    %vm227 = vcmp.lt.s32.totalorder %v226, 2
    %vm228 = vcmp.eq.s32.totalorder %v226, 0
    %v229 = vxor.u32 %v223, 2147483648
    %v230 = vsel %vm228, %v222, %v229
    %vm231 = vcmp.eq.s32.totalorder %v226, 2
    %v232 = vxor.u32 %v222, 2147483648
    %v233 = vsel %vm231, %v232, %v223
    %v234 = vsel %vm227, %v230, %v233
    %v235 = vsel %vm224, nan, %v234
    %v236 = vand.u32 2147483647, %v129
    %vm237 = vcmp.le.f32.partialorder %v236, 0.7853982
    %vm238 = vcmp.lt.s32.totalorder %v129, 0
    %v239 = vand.u32 %v129, 2139095040
    %v240 = vshrl.u32 %v239, 23
    %v241 = vsub.s32 %v240, 127
    %v242 = vand.u32 2147483647, %v129
    %v243 = vand.u32 %v242, 8388607
    %v244 = vor.u32 %v243, 8388608
    %v245 = vsub.s32 0, %v244
    %v246 = vadd.s32 %v241, 1
    %vm247 = vcmp.gt.s32.totalorder %v246, 0
    %v248 = vsel %vm247, %v246, 0
    %v249 = vshrl.u32 %v248, 5
    %v250 = vand.u32 %v248, 31
    %v251 = vsub.s32 32, %v250
    %v252 = vshrl.u32 683565275, %v251
    %v253 = vshll.u32 683565275, %v250
    %v254 = vshrl.u32 2475754826, %v251
    %v255 = vor.u32 %v253, %v254
    %v256 = vshll.u32 2475754826, %v250
    %v257 = vshrl.u32 2131351028, %v251
    %v258 = vor.u32 %v256, %v257
    %v259 = vshll.u32 2131351028, %v250
    %v260 = vshrl.u32 2102212464, %v251
    %v261 = vor.u32 %v259, %v260
    %v262 = vshll.u32 2102212464, %v250
    %v263 = vshrl.u32 920167782, %v251
    %v264 = vor.u32 %v262, %v263
    %v265 = vshll.u32 920167782, %v250
    %v266 = vshrl.u32 1326507024, %v251
    %v267 = vor.u32 %v265, %v266
    %vm268 = vcmp.lt.s32.totalorder %v249, 1
    %vm269 = vcmp.lt.s32.totalorder %v249, 2
    %vm270 = vcmp.lt.s32.totalorder %v249, 3
    %vm271 = vcmp.lt.s32.totalorder %v249, 4
    %v272 = vsel %vm268, %v252, %v255
    %v273 = vsel %vm271, %v261, 2102212464
    %v274 = vsel %vm270, %v258, %v273
    %v275 = vsel %vm269, %v272, %v274
    %v276 = vsel %vm268, %v255, %v258
    %v277 = vsel %vm271, %v264, 920167782
    %v278 = vsel %vm270, %v261, %v277
    %v279 = vsel %vm269, %v276, %v278
    %v280 = vsel %vm268, %v258, %v261
    %v281 = vsel %vm271, %v267, 1326507024
    %v282 = vsel %vm270, %v264, %v281
    %v283 = vsel %vm269, %v280, %v282
    %v284 = vshll.u32 %v244, 8
    %v285 = vmul.u32.u64.compose %v284, %v283
    %v286 = vextract.low.u32 %v285
    %v287 = vextract.high.u32 %v285
    %v288 = vmul.u32.u64.compose %v284, %v279
    %v289 = vextract.low.u32 %v288
    %v290 = vextract.high.u32 %v288
    %v291 = vmul.u32 %v284, %v275
    %v292 = vadd.s32 %v287, %v289
    %vm293 = vc.u32 %v287, %v289
    %v294 = vadd.s32 %v290, 1
    %v295 = vsel %vm293, %v294, %v290
    %v296 = vadd.s32 %v291, %v295
    %v297 = vadd.s32 %v296, 536870912
    %v298 = vshrl.u32 %v297, 30
    %v299 = vshll.u32 %v298, 30
    %v300 = vsub.s32 %v296, %v299
    %vm301 = vcmp.lt.s32.totalorder %v300, 0
    %v302 = vsub.s32 0, %v300
    %v303 = vsel %vm301, %v302, %v300
    %v304 = vclz %v303
    %v305 = vsub.s32 %v304, 2
    %vm306 = vcmp.gt.s32.totalorder 0, %v305
    %v307 = vsel %vm306, 0, %v305
    %v308 = vsub.s32 32, %v307
    %v309 = vshll.u32 %v300, %v307
    %v310 = vshrl.u32 %v292, %v308
    %v311 = vor.u32 %v309, %v310
    %v312 = vsub.s32 4294967266, %v307
    %v313 = vadd.s32 %v312, 127
    %v314 = vshll.u32 %v313, 23
    %v315 = vor.u32 4788187, %v314
    %v316 = vand.u32 2147483647, %v315
    %v318 = vcvt.s32.f32 %v311
    %v319 = vmul.f32 %v318, %v316
    %v320 = vxor.u32 %v319, 2147483648
    %v321 = vsel %vm238, %v320, %v319
    %v322 = vsub.s32 4, %v298
    %v323 = vsel %vm238, %v322, %v298
    %v324 = vsel %vm237, %v129, %v321
    %v325 = vsel %vm237, 0, %v323
    %v326 = vcosq.f32.pop %v324
    %v327 = vsinq.f32.pop %v324
    %vm328 = vweird.f32 %v129
    %v329 = vadd.s32 %v325, 3
    %v330 = vand.u32 %v329, 3
    %vm331 = vcmp.lt.s32.totalorder %v330, 2
    %vm332 = vcmp.eq.s32.totalorder %v330, 0
    %v333 = vxor.u32 %v327, 2147483648
    %v334 = vsel %vm332, %v326, %v333
    %vm335 = vcmp.eq.s32.totalorder %v330, 2
    %v336 = vxor.u32 %v326, 2147483648
    %v337 = vsel %vm335, %v336, %v327
    %v338 = vsel %vm331, %v334, %v337
    %v339 = vsel %vm328, nan, %v338
    %340 = vst [vmem:[#allocation7] sm:$0xff] %v235
    %341 = vst [vmem:[#allocation7 + $0x10] sm:$0xff] %v339
    %v342 = vand.u32 2147483647, %v124
    %vm343 = vcmp.le.f32.partialorder %v342, 0.7853982
    %vm344 = vcmp.lt.s32.totalorder %v124, 0
    %v345 = vand.u32 %v124, 2139095040
    %v346 = vshrl.u32 %v345, 23
    %v347 = vsub.s32 %v346, 127
    %v348 = vand.u32 2147483647, %v124
    %v349 = vand.u32 %v348, 8388607
    %v350 = vor.u32 %v349, 8388608
    %v351 = vsub.s32 0, %v350
    %v352 = vadd.s32 %v347, 1
    %vm353 = vcmp.gt.s32.totalorder %v352, 0
    %v354 = vsel %vm353, %v352, 0
    %v355 = vshrl.u32 %v354, 5
    %v356 = vand.u32 %v354, 31
    %v357 = vsub.s32 32, %v356
    %v358 = vshrl.u32 683565275, %v357
    %v359 = vshll.u32 683565275, %v356
    %v360 = vshrl.u32 2475754826, %v357
    %v361 = vor.u32 %v359, %v360
    %v362 = vshll.u32 2475754826, %v356
    %v363 = vshrl.u32 2131351028, %v357
    %v364 = vor.u32 %v362, %v363
    %v365 = vshll.u32 2131351028, %v356
    %v366 = vshrl.u32 2102212464, %v357
    %v367 = vor.u32 %v365, %v366
    %v368 = vshll.u32 2102212464, %v356
    %v369 = vshrl.u32 920167782, %v357
    %v370 = vor.u32 %v368, %v369
    %v371 = vshll.u32 920167782, %v356
    %v372 = vshrl.u32 1326507024, %v357
    %v373 = vor.u32 %v371, %v372
    %vm374 = vcmp.lt.s32.totalorder %v355, 1
    %vm375 = vcmp.lt.s32.totalorder %v355, 2
    %vm376 = vcmp.lt.s32.totalorder %v355, 3
    %vm377 = vcmp.lt.s32.totalorder %v355, 4
    %v378 = vsel %vm374, %v358, %v361
    %v379 = vsel %vm377, %v367, 2102212464
    %v380 = vsel %vm376, %v364, %v379
    %v381 = vsel %vm375, %v378, %v380
    %v382 = vsel %vm374, %v361, %v364
    %v383 = vsel %vm377, %v370, 920167782
    %v384 = vsel %vm376, %v367, %v383
    %v385 = vsel %vm375, %v382, %v384
    %v386 = vsel %vm374, %v364, %v367
    %v387 = vsel %vm377, %v373, 1326507024
    %v388 = vsel %vm376, %v370, %v387
    %v389 = vsel %vm375, %v386, %v388
    %v390 = vshll.u32 %v350, 8
    %v391 = vmul.u32.u64.compose %v390, %v389
    %v392 = vextract.low.u32 %v391
    %v393 = vextract.high.u32 %v391
    %v394 = vmul.u32.u64.compose %v390, %v385
    %v395 = vextract.low.u32 %v394
    %v396 = vextract.high.u32 %v394
    %v397 = vmul.u32 %v390, %v381
    %v398 = vadd.s32 %v393, %v395
    %vm399 = vc.u32 %v393, %v395
    %v400 = vadd.s32 %v396, 1
    %v401 = vsel %vm399, %v400, %v396
    %v402 = vadd.s32 %v397, %v401
    %v403 = vadd.s32 %v402, 536870912
    %v404 = vshrl.u32 %v403, 30
    %v405 = vshll.u32 %v404, 30
    %v406 = vsub.s32 %v402, %v405
    %vm407 = vcmp.lt.s32.totalorder %v406, 0
    %v408 = vsub.s32 0, %v406
    %v409 = vsel %vm407, %v408, %v406
    %v410 = vclz %v409
    %v411 = vsub.s32 %v410, 2
    %vm412 = vcmp.gt.s32.totalorder 0, %v411
    %v413 = vsel %vm412, 0, %v411
    %v414 = vsub.s32 32, %v413
    %v415 = vshll.u32 %v406, %v413
    %v416 = vshrl.u32 %v398, %v414
    %v417 = vor.u32 %v415, %v416
    %v418 = vsub.s32 4294967266, %v413
    %v419 = vadd.s32 %v418, 127
    %v420 = vshll.u32 %v419, 23
    %v421 = vor.u32 4788187, %v420
    %v422 = vand.u32 2147483647, %v421
    %v424 = vcvt.s32.f32 %v417
    %v425 = vmul.f32 %v424, %v422
    %v426 = vxor.u32 %v425, 2147483648
    %v427 = vsel %vm344, %v426, %v425
    %v428 = vsub.s32 4, %v404
    %v429 = vsel %vm344, %v428, %v404
    %v430 = vsel %vm343, %v124, %v427
    %v431 = vsel %vm343, 0, %v429
    %v432 = vcosq.f32.pop %v430
    %v433 = vsinq.f32.pop %v430
    %vm434 = vweird.f32 %v124
    %v435 = vand.u32 %v431, 3
    %vm436 = vcmp.lt.s32.totalorder %v435, 2
    %vm437 = vcmp.eq.s32.totalorder %v435, 0
    %v438 = vxor.u32 %v433, 2147483648
    %v439 = vsel %vm437, %v432, %v438
    %vm440 = vcmp.eq.s32.totalorder %v435, 2
    %v441 = vxor.u32 %v432, 2147483648
    %v442 = vsel %vm440, %v441, %v433
    %v443 = vsel %vm436, %v439, %v442
    %v444 = vsel %vm434, nan, %v443
    %v445 = vand.u32 2147483647, %v129
    %vm446 = vcmp.le.f32.partialorder %v445, 0.7853982
    %vm447 = vcmp.lt.s32.totalorder %v129, 0
    %v448 = vand.u32 %v129, 2139095040
    %v449 = vshrl.u32 %v448, 23
    %v450 = vsub.s32 %v449, 127
    %v451 = vand.u32 2147483647, %v129
    %v452 = vand.u32 %v451, 8388607
    %v453 = vor.u32 %v452, 8388608
    %v454 = vsub.s32 0, %v453
    %v455 = vadd.s32 %v450, 1
    %vm456 = vcmp.gt.s32.totalorder %v455, 0
    %v457 = vsel %vm456, %v455, 0
    %v458 = vshrl.u32 %v457, 5
    %v459 = vand.u32 %v457, 31
    %v460 = vsub.s32 32, %v459
    %v461 = vshrl.u32 683565275, %v460
    %v462 = vshll.u32 683565275, %v459
    %v463 = vshrl.u32 2475754826, %v460
    %v464 = vor.u32 %v462, %v463
    %v465 = vshll.u32 2475754826, %v459
    %v466 = vshrl.u32 2131351028, %v460
    %v467 = vor.u32 %v465, %v466
    %v468 = vshll.u32 2131351028, %v459
    %v469 = vshrl.u32 2102212464, %v460
    %v470 = vor.u32 %v468, %v469
    %v471 = vshll.u32 2102212464, %v459
    %v472 = vshrl.u32 920167782, %v460
    %v473 = vor.u32 %v471, %v472
    %v474 = vshll.u32 920167782, %v459
    %v475 = vshrl.u32 1326507024, %v460
    %v476 = vor.u32 %v474, %v475
    %vm477 = vcmp.lt.s32.totalorder %v458, 1
    %vm478 = vcmp.lt.s32.totalorder %v458, 2
    %vm479 = vcmp.lt.s32.totalorder %v458, 3
    %vm480 = vcmp.lt.s32.totalorder %v458, 4
    %v481 = vsel %vm477, %v461, %v464
    %v482 = vsel %vm480, %v470, 2102212464
    %v483 = vsel %vm479, %v467, %v482
    %v484 = vsel %vm478, %v481, %v483
    %v485 = vsel %vm477, %v464, %v467
    %v486 = vsel %vm480, %v473, 920167782
    %v487 = vsel %vm479, %v470, %v486
    %v488 = vsel %vm478, %v485, %v487
    %v489 = vsel %vm477, %v467, %v470
    %v490 = vsel %vm480, %v476, 1326507024
    %v491 = vsel %vm479, %v473, %v490
    %v492 = vsel %vm478, %v489, %v491
    %v493 = vshll.u32 %v453, 8
    %v494 = vmul.u32.u64.compose %v493, %v492
    %v495 = vextract.low.u32 %v494
    %v496 = vextract.high.u32 %v494
    %v497 = vmul.u32.u64.compose %v493, %v488
    %v498 = vextract.low.u32 %v497
    %v499 = vextract.high.u32 %v497
    %v500 = vmul.u32 %v493, %v484
    %v501 = vadd.s32 %v496, %v498
    %vm502 = vc.u32 %v496, %v498
    %v503 = vadd.s32 %v499, 1
    %v504 = vsel %vm502, %v503, %v499
    %v505 = vadd.s32 %v500, %v504
    %v506 = vadd.s32 %v505, 536870912
    %v507 = vshrl.u32 %v506, 30
    %v508 = vshll.u32 %v507, 30
    %v509 = vsub.s32 %v505, %v508
    %vm510 = vcmp.lt.s32.totalorder %v509, 0
    %v511 = vsub.s32 0, %v509
    %v512 = vsel %vm510, %v511, %v509
    %v513 = vclz %v512
    %v514 = vsub.s32 %v513, 2
    %vm515 = vcmp.gt.s32.totalorder 0, %v514
    %v516 = vsel %vm515, 0, %v514
    %v517 = vsub.s32 32, %v516
    %v518 = vshll.u32 %v509, %v516
    %v519 = vshrl.u32 %v501, %v517
    %v520 = vor.u32 %v518, %v519
    %v521 = vsub.s32 4294967266, %v516
    %v522 = vadd.s32 %v521, 127
    %v523 = vshll.u32 %v522, 23
    %v524 = vor.u32 4788187, %v523
    %v525 = vand.u32 2147483647, %v524
    %v527 = vcvt.s32.f32 %v520
    %v528 = vmul.f32 %v527, %v525
    %v529 = vxor.u32 %v528, 2147483648
    %v530 = vsel %vm447, %v529, %v528
    %v531 = vsub.s32 4, %v507
    %v532 = vsel %vm447, %v531, %v507
    %v533 = vsel %vm446, %v129, %v530
    %v534 = vsel %vm446, 0, %v532
    %v535 = vcosq.f32.pop %v533
    %v536 = vsinq.f32.pop %v533
    %vm537 = vweird.f32 %v129
    %v538 = vand.u32 %v534, 3
    %vm539 = vcmp.lt.s32.totalorder %v538, 2
    %vm540 = vcmp.eq.s32.totalorder %v538, 0
    %v541 = vxor.u32 %v536, 2147483648
    %v542 = vsel %vm540, %v535, %v541
    %vm543 = vcmp.eq.s32.totalorder %v538, 2
    %v544 = vxor.u32 %v535, 2147483648
    %v545 = vsel %vm543, %v544, %v536
    %v546 = vsel %vm539, %v542, %v545
    %v547 = vsel %vm537, nan, %v546
    %548 = vst [vmem:[#allocation7 + $0x8] sm:$0xff] %v444
    %549 = vst [vmem:[#allocation7 + $0x18] sm:$0xff] %v547
    // Predicated region
    $region18: #{tpu_custom_call.1} parent=1 // pred_check
      _
    $region19: #{tpu_custom_call.1} parent=1 // pred_check_branch
      %551 = sbr.rel (0) target = $region21
    $region20: #{tpu_custom_call.1} parent=1 // pred_region
      %s553 = ssub.s32 512, 512
      %554 = vsyncadd [#allocation4], %s553
      %s555 = sshll.u32 [#allocation7], 4
      %s556 = int_to_ptr.vmem [resolvable:$true] %s555
      %561 = dma.vmem_to_hbm [thread:$0]  %s556, 512, %s2, [#allocation4], 256, 256, 16
    $region21: #{tpu_custom_call.1} parent=1 // pred_fallthru
      _
    // Predicated region
    $region22: #{tpu_custom_call.1} parent=1 // pred_check
      _
    $region23: #{tpu_custom_call.1} parent=1 // pred_check_branch
      %563 = sbr.rel (0) target = $region25
    $region24: #{tpu_custom_call.1} parent=1 // pred_region
      %564 = dma.done [#allocation4], 512
    $region25: #{tpu_custom_call.1} parent=1 // pred_fallthru
      _
    %565 = vsyncpa [#allocation3], 1
    %566 = vsyncpa [#allocation6], 1
    %567 = vsyncpa [#allocation4], 1

</llo_original>
